<compile_context>
chip_gen: v5e
topology: v5e:2x2
jax: 0.10.0
libtpu: 0.0.40
codegen_flags: <defaults>
</compile_context>

<pallas_src>
import jax
import jax.numpy as jnp
from jax.experimental import pallas as pl
from jax.experimental.pallas import tpu as pltpu


def _aggregate_kernel(pref_ref, c_ref, u_ref, acc_ref):
    """Process one (bt, nt, D) pref tile; accumulate u over the N grid axis.

    pref_ref : (bt, nt, D)   input tile
    c_ref    : (bt, 1,  D)   context tile (same block for every N step)
    u_ref    : (bt, 1,  D)   output tile (written on the last N step only)
    acc_ref  : (bt, D) f32   VMEM accumulator, persists across N steps
    """
    k = pl.program_id(1)

    @pl.when(k == 0)
    def _():
        acc_ref[...] = jnp.zeros_like(acc_ref)

    pref = pref_ref[...].astype(jnp.float32)               # (bt, nt, D)
    c = c_ref[...].astype(jnp.float32)                     # (bt, 1, D)

    # weights = sum(pref * c, axis=-1, keepdims=True)      -> (bt, nt, 1)
    weights = jnp.sum(pref * c, axis=-1, keepdims=True)
    # partial u = sum(weights * pref, axis=-2)              -> (bt, D)
    acc_ref[...] += jnp.sum(weights * pref, axis=-2)

    @pl.when(k == pl.num_programs(1) - 1)
    def _():
        u_ref[...] = acc_ref[...][:, None, :].astype(u_ref.dtype)


def _vmem_budget_bytes():
    """Chip-aware (working-set target, scoped-VMEM limit) in bytes."""
    try:
        phys = int(pltpu.get_tpu_info().vmem_capacity_bytes)
    except Exception:
        phys = 64 * 1024 * 1024          # v7x-class conservative fallback
    # Working-set target ~40% of physical VMEM, capped: ~48 MiB on 128 MiB
    # chips (v5e/v6e), ~25 MiB on v7x (64 MiB) -- leaves room for the
    # double-buffered DMAs, small c/u buffers and compiler scratch.
    target = min(phys * 2 // 5, 48 * 1024 * 1024)
    # Scoped-VMEM limit requested from Mosaic (>= target, <= 75% of physical).
    limit = min(phys * 3 // 4, 96 * 1024 * 1024)
    return target, limit


def aggregate_layer(pref, c):
    """Pallas implementation of AggregateLayer.forward.

    pref: (B, N, D);  c: (B, 1, D);  returns u: (B, 1, D)  (torch keepdim=True)
    """
    B, N, D = pref.shape
    assert c.shape == (B, 1, D), f"c shape {c.shape} != {(B, 1, D)}"

    itemsize = jnp.dtype(pref.dtype).itemsize
    target_bytes, vmem_limit = _vmem_budget_bytes()

    # VMEM cost per pref element in one block: double-buffered input DMA slab
    # plus ~3 full-block f32 temporaries in the body (pref_f32, pref*c,
    # weights*pref).
    per_elem = 2 * itemsize + 3 * 4
    max_block_elems = max(1, target_bytes // per_elem)

    def round_up(x, m):
        return ((x + m - 1) // m) * m

    if N * D <= max_block_elems:
        # A full (N, D) row fits per step: tile over batch only.
        nt, Np = N, N
        bt = max(1, min(B, max_block_elems // (N * D)))
        # v7x has 2 TensorCores: guarantee >= 2 steps on the "parallel" batch
        # axis so both cores get work.  On 1-TC chips this costs one extra
        # ~0.35 us grid step, negligible at these block sizes.
        if bt >= B and B >= 2:
            bt = -(-B // 2)                     # ceil(B / 2) -> 2 batch steps
    else:
        # A single batch row exceeds the budget: keep bt = 1 and tile N in
        # sublane-aligned chunks, accumulating into the f32 scratch.
        bt = 1
        nt = max(8, (max_block_elems // D) // 8 * 8)
        nt = min(nt, round_up(N, 8))
        Np = round_up(N, nt)
        # TODO(synk): if even a (1, 8, D) chunk exceeds the budget (enormous
        # D), a further D-tiling pass over `weights` would be required.

    Bp = round_up(B, bt)

    # Zero-pad ragged batch / N tails; zero rows contribute nothing to either
    # reduction and padded output rows are sliced off below.
    if Bp != B or Np != N:
        pref = jnp.pad(pref, ((0, Bp - B), (0, Np - N), (0, 0)))
    if Bp != B:
        c = jnp.pad(c, ((0, Bp - B), (0, 0), (0, 0)))

    grid = (Bp // bt, Np // nt)

    u = pl.pallas_call(
        _aggregate_kernel,
        out_shape=jax.ShapeDtypeStruct((Bp, 1, D), pref.dtype),
        grid_spec=pltpu.PrefetchScalarGridSpec(
            num_scalar_prefetch=0,
            grid=grid,
            in_specs=[
                pl.BlockSpec((bt, nt, D), lambda b, k: (b, k, 0)),
                pl.BlockSpec((bt, 1, D), lambda b, k: (b, 0, 0)),
            ],
            out_specs=pl.BlockSpec((bt, 1, D), lambda b, k: (b, 0, 0)),
            scratch_shapes=[pltpu.VMEM((bt, D), jnp.float32)],
        ),
        compiler_params=pltpu.CompilerParams(
            dimension_semantics=("parallel", "arbitrary"),
            vmem_limit_bytes=vmem_limit,
        ),
    )(pref, c)

    return u[:B]


def _reference(pref, c):
    weights = jnp.sum(pref * c, axis=-1, keepdims=True)
    return jnp.sum(weights * pref, axis=-2, keepdims=True)


if __name__ == "__main__":
    # Small shapes consistent with the module: batch=2, n_assign=8, dim_node=32.
    key = jax.random.PRNGKey(0)
    k1, k2 = jax.random.split(key)
    B, N, D = 2, 8, 32
    pref = jax.random.normal(k1, (B, N, D), dtype=jnp.float32)
    c = jax.random.normal(k2, (B, 1, D), dtype=jnp.float32)

    u = aggregate_layer(pref, c)
    u = jax.block_until_ready(u)

    ref = _reference(pref, c)
    assert u.shape == (B, 1, D), u.shape
    assert jnp.allclose(u, ref, atol=1e-5, rtol=1e-5), "mismatch vs reference"

    print("KERNEL_OK")
</pallas_src>

<mosaic_0001>
module attributes {stable_mosaic.version = 11 : i64} {
  func.func @_aggregate_kernel(%arg0: i32, %arg1: i32, %arg2: memref<1x8x32xf32, #tpu.memory_space<vmem>>, %arg3: memref<1x1x32xf32, #tpu.memory_space<vmem>>, %arg4: memref<1x1x32xf32, #tpu.memory_space<vmem>>, %arg5: memref<1x32xf32, #tpu.memory_space<vmem>>) attributes {dimension_semantics = [#tpu.dimension_semantics<parallel>, #tpu.dimension_semantics<arbitrary>], iteration_bounds = array<i64: 2, 1>, scalar_prefetch = 0 : i64, scratch_operands = 1 : i64, tpu.core_type = #tpu.core_type<tc>, window_params = [{transform_indices = @transform_0, window_bounds = array<i64: 1, 8, 32>}, {transform_indices = @transform_1, window_bounds = array<i64: 1, 1, 32>}, {transform_indices = @transform_2, window_bounds = array<i64: 1, 1, 32>}]} {
    %c0_i32 = arith.constant 0 : i32
    %0 = arith.cmpi eq, %arg1, %c0_i32 : i32
    %1 = arith.extui %0 : i1 to i32
    %c0_i32_0 = arith.constant 0 : i32
    %2 = arith.cmpi ne, %1, %c0_i32_0 : i32
    scf.if %2 {
      %cst_13 = arith.constant 0.000000e+00 : f32
      %18 = vector.broadcast %cst_13 : f32 to vector<1x32xf32>
      %c0_14 = arith.constant 0 : index
      %c0_15 = arith.constant 0 : index
      %19 = vector.load %arg5[%c0_14, %c0_15] : memref<1x32xf32, #tpu.memory_space<vmem>>, vector<1x32xf32>
      tpu.vector_store %arg5[%c0_14, %c0_15], %18 {strides = array<i32>} : memref<1x32xf32, #tpu.memory_space<vmem>>, vector<1x32xf32>,
    } else {
    }
    %c0 = arith.constant 0 : index
    %c0_1 = arith.constant 0 : index
    %c0_2 = arith.constant 0 : index
    %3 = vector.load %arg2[%c0, %c0_1, %c0_2] : memref<1x8x32xf32, #tpu.memory_space<vmem>>, vector<1x8x32xf32>
    %c0_3 = arith.constant 0 : index
    %c0_4 = arith.constant 0 : index
    %c0_5 = arith.constant 0 : index
    %4 = vector.load %arg3[%c0_3, %c0_4, %c0_5] : memref<1x1x32xf32, #tpu.memory_space<vmem>>, vector<1x1x32xf32>
    %5 = vector.broadcast %4 : vector<1x1x32xf32> to vector<1x8x32xf32>
    %6 = arith.mulf %3, %5 : vector<1x8x32xf32>
    %cst = arith.constant dense<0.000000e+00> : vector<1x8xf32>
    %7 = vector.multi_reduction <add>, %6, %cst [2] : vector<1x8x32xf32> to vector<1x8xf32>
    %8 = vector.shape_cast %7 : vector<1x8xf32> to vector<1x8x1xf32>
    %c0_6 = arith.constant 0 : index
    %c0_7 = arith.constant 0 : index
    %9 = vector.load %arg5[%c0_6, %c0_7] : memref<1x32xf32, #tpu.memory_space<vmem>>, vector<1x32xf32>
    %10 = vector.broadcast %8 : vector<1x8x1xf32> to vector<1x8x32xf32>
    %11 = arith.mulf %10, %3 : vector<1x8x32xf32>
    %cst_8 = arith.constant dense<0.000000e+00> : vector<1x32xf32>
    %12 = vector.multi_reduction <add>, %11, %cst_8 [1] : vector<1x8x32xf32> to vector<1x32xf32>
    %13 = arith.addf %9, %12 : vector<1x32xf32>
    %c0_9 = arith.constant 0 : index
    %c0_10 = arith.constant 0 : index
    %14 = vector.load %arg5[%c0_9, %c0_10] : memref<1x32xf32, #tpu.memory_space<vmem>>, vector<1x32xf32>
    tpu.vector_store %arg5[%c0_9, %c0_10], %13 {strides = array<i32>} : memref<1x32xf32, #tpu.memory_space<vmem>>, vector<1x32xf32>,
    %c0_i32_11 = arith.constant 0 : i32
    %15 = arith.cmpi eq, %arg1, %c0_i32_11 : i32
    %16 = arith.extui %15 : i1 to i32
    %c0_i32_12 = arith.constant 0 : i32
    %17 = arith.cmpi ne, %16, %c0_i32_12 : i32
    scf.if %17 {
      %c0_13 = arith.constant 0 : index
      %c0_14 = arith.constant 0 : index
      %18 = vector.load %arg5[%c0_13, %c0_14] : memref<1x32xf32, #tpu.memory_space<vmem>>, vector<1x32xf32>
      %19 = vector.shape_cast %18 : vector<1x32xf32> to vector<1x1x32xf32>
      %c0_15 = arith.constant 0 : index
      %c0_16 = arith.constant 0 : index
      %c0_17 = arith.constant 0 : index
      %20 = vector.load %arg4[%c0_15, %c0_16, %c0_17] : memref<1x1x32xf32, #tpu.memory_space<vmem>>, vector<1x1x32xf32>
      tpu.vector_store %arg4[%c0_15, %c0_16, %c0_17], %19 {strides = array<i32>} : memref<1x1x32xf32, #tpu.memory_space<vmem>>, vector<1x1x32xf32>,
    } else {
    }
    return
  }
  func.func @transform_0(%arg0: i32, %arg1: i32) -> (i32, i32, i32) {
    %c0_i32 = arith.constant 0 : i32
    %c0_i32_0 = arith.constant 0 : i32
    return %arg0, %arg1, %c0_i32 : i32, i32, i32
  }
  func.func @transform_1(%arg0: i32, %arg1: i32) -> (i32, i32, i32) {
    %c0_i32 = arith.constant 0 : i32
    %c0_i32_0 = arith.constant 0 : i32
    %c0_i32_1 = arith.constant 0 : i32
    return %arg0, %c0_i32, %c0_i32_0 : i32, i32, i32
  }
  func.func @transform_2(%arg0: i32, %arg1: i32) -> (i32, i32, i32) {
    %c0_i32 = arith.constant 0 : i32
    %c0_i32_0 = arith.constant 0 : i32
    %c0_i32_1 = arith.constant 0 : i32
    return %arg0, %c0_i32, %c0_i32_0 : i32, i32, i32
  }
}

</mosaic_0001>

<llo_original>
// kernel: tpu_custom_call.1
$region0: #{tpu_custom_call.1}
  #allocation0 [shape = 'u32[]', space=smem, size = 0x4, offset = 0x4, fixed_abs, tag = 'smem constant byte address 0x4 - core index']
  #allocation1 [shape = 'u32[72,128]{1,0:T(1,128)}', space=vmem, size = 0x9000, scoped, tag = 'internal scratch']
  #allocation2 [shape = 'f32[1,32]{1,0:T(1,128)}', space=vmem, size = 0x200, scoped, tag = 'scratch operand']
  %s0 = inlined_call_operand.hbm [shape: f32[2,8,32], index: 0, kind: input, shape index: {}]
  %s1 = inlined_call_operand.hbm [shape: f32[2,1,32], index: 1, kind: input, shape index: {}]
  %s2 = inlined_call_operand.hbm [shape: f32[2,1,32], index: 2, kind: output, shape index: {}]
  %s3 = sld [smem:[#allocation0]]
  $region57: #{tpu_custom_call.1} parent=0
    _
  %s5 = ssub.s32 1, %s3
  %s6 = scalar_select 0, %s5, %s3
  $region1: #{tpu_custom_call.1} parent=0
    #allocation3 [shape = 'u8[8192]{0}', space=vmem, size = 0x2000, scoped, tag = 'input window, operand 0']
    #allocation4 [shape = 's32[2]{0}', space=sflag, size = 0x8, scoped, tag = 'scoped memory for tpu_custom_call.1']
    #allocation5 [shape = 's32[2]{0}', space=sflag, size = 0x8, scoped, tag = 'scoped memory for tpu_custom_call.1']
    #allocation6 [shape = 'u8[1024]{0}', space=vmem, size = 0x400, scoped, tag = 'input window, operand 1']
    #allocation7 [shape = 's32[2]{0}', space=sflag, size = 0x8, scoped, tag = 'scoped memory for tpu_custom_call.1']
    #allocation8 [shape = 'u8[1024]{0}', space=vmem, size = 0x400, scoped, tag = 'output window, operand 0']
    %7 = vsyncpa [#allocation4], 0
    %s8 = scalar_lea.sflag [#allocation4], 1
    %9 = vsyncpa %s8, 0
    %10 = vsyncpa [#allocation7], 0
    %s11 = scalar_lea.sflag [#allocation7], 1
    %12 = vsyncpa %s11, 0
    %13 = vsyncpa [#allocation5], 0
    %s14 = scalar_lea.sflag [#allocation5], 1
    %15 = vsyncpa %s14, 0
    loop: start=0, step=1, limit=4
    $region2: #{tpu_custom_call.1} parent=1 // loop_pre_header
      _
    $region3: #{tpu_custom_call.1} parent=1 // loop_header
      %s17 = sphi 0, %s21
      %p18 = scmp.ge.s32.totalorder %s17, 4
      %s24 = sphi 0, %s36
      %s25 = sphi 0, %s32
      %s26 = sphi 0, %s24
      %s27 = sphi 0, %s25
      %s28 = sphi 0, %s26
      %s29 = sphi 0, %s27
      %s41 = sphi 0, %s43
      %s44 = sphi 0, %s41
      %s45 = sphi 0, %s44
      %s61 = sphi 0, %s45
      %s67 = sphi 0, %s69
      %s70 = sphi 0, %s67
      %s71 = sphi 0, %s70
      %s87 = sphi 0, %s71
      %s93 = sphi 0, %s95
      %s96 = sphi 0, %s93
      %s97 = sphi 0, %s96
      %s113 = sphi 0, %s97
    $region4: #{tpu_custom_call.1} parent=1 // loop_header_branch
      %20 = sbr.rel (%p18) target = $region8
    $region5: #{tpu_custom_call.1} parent=1 // loop_body
      %s22 = ssub.s32 %s17, 1
      %s23 = ssub.s32 %s17, 2
      %s30 = sadd.s32 1, %s25
      %p31 = scmp.ge.s32.totalorder %s30, 1
      %s32 = scalar_select %p31, 0, %s30
      %s33 = sadd.s32 1, %s24
      %s34 = scalar_select %p31, %s33, %s24
      %p35 = scmp.ge.s32.totalorder %s34, 2
      %s36 = scalar_select %p35, 0, %s34
      %s37 = ssub.s32 %s24, %s36
      %s38 = ssub.s32 %s25, %s32
      %s39 = sor.u32 %s37, %s38
      %p40 = scmp.eq.s32.totalorder %s39, 0
      %s42 = sadd.s32 %s41, 1
      %s43 = scalar_select %p40, %s41, %s42
      %p46 = pneg %p40
      %p47 = scmp.eq.s32.totalorder %s17, 1
      %p48 = por %p46, %p47
      %p49 = scmp.ne.s32.totalorder %s41, %s44
      %p50 = scmp.eq.s32.totalorder %s17, 0
      %p51 = por %p49, %p50
      %p52 = scmp.ne.s32.totalorder %s41, %s44
      %p53 = scmp.eq.s32.totalorder %s22, 1
      %p54 = por %p52, %p53
      %p55 = scmp.ne.s32.totalorder %s44, %s45
      %p56 = scmp.eq.s32.totalorder %s22, 0
      %p57 = por %p55, %p56
      %p58 = scmp.ne.s32.totalorder %s44, %s45
      %p59 = scmp.eq.s32.totalorder %s23, 1
      %p60 = por %p58, %p59
      %p62 = scmp.ne.s32.totalorder %s45, %s61
      %p63 = scmp.eq.s32.totalorder %s23, 0
      %p64 = por %p62, %p63
      %s65 = ssub.s32 %s24, %s36
      %p66 = scmp.eq.s32.totalorder %s65, 0
      %s68 = sadd.s32 %s67, 1
      %s69 = scalar_select %p66, %s67, %s68
      %p72 = pneg %p66
      %p73 = scmp.eq.s32.totalorder %s17, 1
      %p74 = por %p72, %p73
      %p75 = scmp.ne.s32.totalorder %s67, %s70
      %p76 = scmp.eq.s32.totalorder %s17, 0
      %p77 = por %p75, %p76
      %p78 = scmp.ne.s32.totalorder %s67, %s70
      %p79 = scmp.eq.s32.totalorder %s22, 1
      %p80 = por %p78, %p79
      %p81 = scmp.ne.s32.totalorder %s70, %s71
      %p82 = scmp.eq.s32.totalorder %s22, 0
      %p83 = por %p81, %p82
      %p84 = scmp.ne.s32.totalorder %s70, %s71
      %p85 = scmp.eq.s32.totalorder %s23, 1
      %p86 = por %p84, %p85
      %p88 = scmp.ne.s32.totalorder %s71, %s87
      %p89 = scmp.eq.s32.totalorder %s23, 0
      %p90 = por %p88, %p89
      %s91 = ssub.s32 %s24, %s36
      %p92 = scmp.eq.s32.totalorder %s91, 0
      %s94 = sadd.s32 %s93, 1
      %s95 = scalar_select %p92, %s93, %s94
      %p98 = pneg %p92
      %p99 = scmp.eq.s32.totalorder %s17, 1
      %p100 = por %p98, %p99
      %p101 = scmp.ne.s32.totalorder %s93, %s96
      %p102 = scmp.eq.s32.totalorder %s17, 0
      %p103 = por %p101, %p102
      %p104 = scmp.ne.s32.totalorder %s93, %s96
      %p105 = scmp.eq.s32.totalorder %s22, 1
      %p106 = por %p104, %p105
      %p107 = scmp.ne.s32.totalorder %s96, %s97
      %p108 = scmp.eq.s32.totalorder %s22, 0
      %p109 = por %p107, %p108
      %p110 = scmp.ne.s32.totalorder %s96, %s97
      %p111 = scmp.eq.s32.totalorder %s23, 1
      %p112 = por %p110, %p111
      %p114 = scmp.ne.s32.totalorder %s97, %s113
      %p115 = scmp.eq.s32.totalorder %s23, 0
      %p116 = por %p114, %p115
      %p117 = scmp.le.s32.totalorder 1, %s17
      %p118 = scmp.lt.s32.totalorder %s17, 3
      %p119 = pnand %p117, %p118
      %p120 = pneg %p119
      // Predicated region
      $region9: #{tpu_custom_call.1} parent=5 // pred_check
        _
      $region10: #{tpu_custom_call.1} parent=5 // pred_check_branch
        %122 = sbr.rel (%p119) target = $region12
      $region11: #{tpu_custom_call.1} parent=5 // pred_region
        %s123 = ssub.s32 %s17, 1
      $region12: #{tpu_custom_call.1} parent=5 // pred_fallthru
        _
      %p124 = scmp.lt.s32.totalorder %s17, 2
      // Predicated region
      $region13: #{tpu_custom_call.1} parent=5 // pred_check
        %p125 = pneg %p124
      $region14: #{tpu_custom_call.1} parent=5 // pred_check_branch
        %127 = sbr.rel (%p125) target = $region16
      $region15: #{tpu_custom_call.1} parent=5 // pred_region
        // Predicated region
        $region17: #{tpu_custom_call.1} parent=15 // pred_check
          %p128 = pneg %p51
        $region18: #{tpu_custom_call.1} parent=15 // pred_check_branch
          %130 = sbr.rel (%p128) target = $region20
        $region19: #{tpu_custom_call.1} parent=15 // pred_region
          %s131 = sand.u32 %s41, 1
          %s132 = scalar_lea.sflag [#allocation4], %s131
          %s133 = sand.u32 %s41, 1
          %s134 = smul.addr %s133, 8
          %s135 = scalar_lea.vmem [#allocation3], %s134
          %137 = vsyncadd %s132, 0
          %s138 = sadd.s32 %s25, %s24
          %s139 = smul.addr %s138, 8
          %s140 = scalar_lea.hbm %s0, %s139
          %s142 = sshll.u32 %s140, 4
          %s143 = int_to_ptr.hbm [resolvable:$true] %s142
          %s144 = sshll.u32 %s135, 4
          %s145 = int_to_ptr.vmem [resolvable:$true] %s144
          %147 = dma.hbm_to_vmem [thread:$0]  %s143, 128, %s145, %s132
        $region20: #{tpu_custom_call.1} parent=15 // pred_fallthru
          _
        // Predicated region
        $region21: #{tpu_custom_call.1} parent=15 // pred_check
          %p148 = pneg %p77
        $region22: #{tpu_custom_call.1} parent=15 // pred_check_branch
          %150 = sbr.rel (%p148) target = $region24
        $region23: #{tpu_custom_call.1} parent=15 // pred_region
          %s151 = sand.u32 %s67, 1
          %s152 = scalar_lea.sflag [#allocation7], %s151
          %s153 = sand.u32 %s67, 1
          %s154 = scalar_lea.vmem [#allocation6], %s153
          %156 = vsyncadd %s152, 0
          %s157 = scalar_lea.hbm %s1, %s24
          %s159 = sshll.u32 %s157, 4
          %s160 = int_to_ptr.hbm [resolvable:$true] %s159
          %s161 = sshll.u32 %s154, 4
          %s162 = int_to_ptr.vmem [resolvable:$true] %s161
          %164 = dma.hbm_to_vmem [thread:$0]  %s160, 16, %s162, %s152
        $region24: #{tpu_custom_call.1} parent=15 // pred_fallthru
          _
      $region16: #{tpu_custom_call.1} parent=5 // pred_fallthru
        _
      %p165 = scmp.le.s32.totalorder 1, %s17
      %p166 = scmp.lt.s32.totalorder %s17, 3
      %p167 = pnand %p165, %p166
      %p168 = pneg %p167
      // Predicated region
      $region25: #{tpu_custom_call.1} parent=5 // pred_check
        _
      $region26: #{tpu_custom_call.1} parent=5 // pred_check_branch
        %170 = sbr.rel (%p167) target = $region28
      $region27: #{tpu_custom_call.1} parent=5 // pred_region
        %s171 = ssub.s32 %s17, 1
        %s172 = sand.u32 %s44, 1
        %s173 = scalar_lea.sflag [#allocation4], %s172
        %s174 = sand.u32 %s44, 1
        %s175 = smul.addr %s174, 8
        %s176 = scalar_lea.vmem [#allocation3], %s175
        // Predicated region
        $region29: #{tpu_custom_call.1} parent=27 // pred_check
          %p177 = pneg %p57
        $region30: #{tpu_custom_call.1} parent=27 // pred_check_branch
          %179 = sbr.rel (%p177) target = $region32
        $region31: #{tpu_custom_call.1} parent=27 // pred_region
          %181 = dma.done %s173, 128
        $region32: #{tpu_custom_call.1} parent=27 // pred_fallthru
          _
        %s182 = sand.u32 %s70, 1
        %s183 = scalar_lea.sflag [#allocation7], %s182
        %s184 = sand.u32 %s70, 1
        %s185 = scalar_lea.vmem [#allocation6], %s184
        // Predicated region
        $region33: #{tpu_custom_call.1} parent=27 // pred_check
          %p186 = pneg %p83
        $region34: #{tpu_custom_call.1} parent=27 // pred_check_branch
          %188 = sbr.rel (%p186) target = $region36
        $region35: #{tpu_custom_call.1} parent=27 // pred_region
          %190 = dma.done %s183, 16
        $region36: #{tpu_custom_call.1} parent=27 // pred_fallthru
          _
        %s191 = sand.u32 %s44, 1
        %s192 = scalar_lea.sflag [#allocation4], %s191
        %s193 = sand.u32 %s44, 1
        %s194 = smul.addr %s193, 8
        %s195 = scalar_lea.vmem [#allocation3], %s194
        %p196 = pneg %p57
        %p197 = pneg %p54
        %s198 = sand.u32 %s70, 1
        %s199 = scalar_lea.sflag [#allocation7], %s198
        %s200 = sand.u32 %s70, 1
        %s201 = scalar_lea.vmem [#allocation6], %s200
        %p202 = pneg %p83
        %p203 = pneg %p80
        %p204 = pneg %p109
        %p205 = pneg %p106
        %s206 = sand.u32 %s96, 1
        %s207 = scalar_lea.sflag [#allocation5], %s206
        %s208 = sand.u32 %s96, 1
        %s209 = scalar_lea.vmem [#allocation8], %s208
        %p210 = scmp.eq.s32.totalorder %s27, 0
        // Predicated region
        $region37: #{tpu_custom_call.1} parent=27 // pred_check
          %p211 = pneg %p210
        $region38: #{tpu_custom_call.1} parent=27 // pred_check_branch
          %213 = sbr.rel (%p211) target = $region40
        $region39: #{tpu_custom_call.1} parent=27 // pred_region
          %vm214 = vcmask 253952
          %215 = vst.msk [vmem:[#allocation2] sm:$0x1] %vm214, 0.0
        $region40: #{tpu_custom_call.1} parent=27 // pred_fallthru
          _
        %v216 = vld [vmem:[%s176] sm:$0xff]
        %v217 = vld [vmem:[%s185] sm:$0x1]
        %v219 = vperm.slane %v217, 0
        %v221 = vmul.f32 %v216, %v219
        %vm222 = vcmask 261120
        %v223 = vsel %vm222, %v221, 0.0
        %224 = vadd.xlane.f32.xlu0 %v223
        %v225 = vpop.xlane.xlu0 %224
        %v226 = vld [vmem:[#allocation2] sm:$0x1]
        %v227 = vmul.f32 %v225, %v216
        %v228 = vsel %vm222, %v227, 0.0
        %v229 = vrot.slane %v228, 4
        %v230 = vadd.f32 %v228, %v229
        %v231 = vrot.slane %v230, 2
        %v232 = vadd.f32 %v230, %v231
        %v233 = vrot.slane %v232, 1
        %v234 = vadd.f32 %v232, %v233
        %v235 = vadd.f32 %v226, %v234
        %vm236 = vcmask 253952
        %237 = vst.msk [vmem:[#allocation2] sm:$0x1] %vm236, %v235
        // Predicated region
        $region41: #{tpu_custom_call.1} parent=27 // pred_check
          %p238 = pneg %p210
        $region42: #{tpu_custom_call.1} parent=27 // pred_check_branch
          %240 = sbr.rel (%p238) target = $region44
        $region43: #{tpu_custom_call.1} parent=27 // pred_region
          %v241 = vld [vmem:[#allocation2] sm:$0x1]
          %242 = vst.msk [vmem:[%s209] sm:$0x1] %vm236, %v241
        $region44: #{tpu_custom_call.1} parent=27 // pred_fallthru
          _
        %s243 = sand.u32 %s96, 1
        %s244 = scalar_lea.sflag [#allocation5], %s243
        %s245 = sand.u32 %s96, 1
        %s246 = scalar_lea.vmem [#allocation8], %s245
        // Predicated region
        $region45: #{tpu_custom_call.1} parent=27 // pred_check
          %p247 = pneg %p106
        $region46: #{tpu_custom_call.1} parent=27 // pred_check_branch
          %249 = sbr.rel (%p247) target = $region48
        $region47: #{tpu_custom_call.1} parent=27 // pred_region
          %251 = vsyncadd %s244, 0
          %s252 = scalar_lea.hbm %s2, %s26
          %s254 = sshll.u32 %s246, 4
          %s255 = int_to_ptr.vmem [resolvable:$true] %s254
          %s256 = sshll.u32 %s252, 4
          %s257 = int_to_ptr.hbm [resolvable:$true] %s256
          %259 = dma.vmem_to_hbm [thread:$0]  %s255, 16, %s257, %s244
        $region48: #{tpu_custom_call.1} parent=27 // pred_fallthru
          _
      $region28: #{tpu_custom_call.1} parent=5 // pred_fallthru
        _
      %p260 = scmp.le.s32.totalorder 2, %s17
      // Predicated region
      $region49: #{tpu_custom_call.1} parent=5 // pred_check
        %p261 = pneg %p260
      $region50: #{tpu_custom_call.1} parent=5 // pred_check_branch
        %263 = sbr.rel (%p261) target = $region52
      $region51: #{tpu_custom_call.1} parent=5 // pred_region
        %s264 = ssub.s32 %s17, 2
        // Predicated region
        $region53: #{tpu_custom_call.1} parent=51 // pred_check
          %p265 = pneg %p112
        $region54: #{tpu_custom_call.1} parent=51 // pred_check_branch
          %267 = sbr.rel (%p265) target = $region56
        $region55: #{tpu_custom_call.1} parent=51 // pred_region
          %s268 = sand.u32 %s97, 1
          %s269 = scalar_lea.sflag [#allocation5], %s268
          %s270 = sand.u32 %s97, 1
          %s271 = scalar_lea.vmem [#allocation8], %s270
          %273 = dma.done %s269, 16
        $region56: #{tpu_custom_call.1} parent=51 // pred_fallthru
          _
      $region52: #{tpu_custom_call.1} parent=5 // pred_fallthru
        _
    $region6: #{tpu_custom_call.1} parent=1 // loop_footer
      %s21 = sadd.s32 1, %s17
    $region7: #{tpu_custom_call.1} parent=1 // loop_footer_branch
      %16 = sbr.rel target = $region3
    $region8: #{tpu_custom_call.1} parent=1 // loop_exit
      _
    %274 = vsyncpa [#allocation4], 1
    %s275 = scalar_lea.sflag [#allocation4], 1
    %276 = vsyncpa %s275, 1
    %277 = vsyncpa [#allocation7], 1
    %s278 = scalar_lea.sflag [#allocation7], 1
    %279 = vsyncpa %s278, 1
    %280 = vsyncpa [#allocation5], 1
    %s281 = scalar_lea.sflag [#allocation5], 1
    %282 = vsyncpa %s281, 1

</llo_original>
